<compile_context>
chip_gen: v7x
topology: tpu7x:2x2x1
jax: 0.10.0
libtpu: 0.0.40
codegen_flags: <defaults>
</compile_context>

<pallas_src>
import jax
import jax.numpy as jnp
from jax.experimental import pallas as pl
from jax.experimental.pallas import tpu as pltpu


def _round_up(n, m):
    return ((n + m - 1) // m) * m


def _choose_tile_b(batch):
    """Largest batch tile up to 256 rows (fills the 256-row MXU on v6e/v7x;
    128-row tiles already saturate v5e's 4x128x128 MXU), while keeping
    >= 2 grid steps when the batch allows so the 'parallel' batch axis can be
    sharded across v7x's two TensorCores.  Always a multiple of 8 (sublane)."""
    return max(8, min(256, _round_up(max(batch // 2, 1), 8)))


def _linear_model_kernel(
    x_ref,
    wi_ref, bi_ref,          # inputBlock
    w1a_ref, b1a_ref,        # Block1 layer a
    w1b_ref, b1b_ref,        # Block1 layer b
    w2a_ref, b2a_ref,        # Block2 layer a
    w2b_ref, b2b_ref,        # Block2 layer b
    wo_ref, bo_ref,          # outputBlock
    o_ref,
):
    def lin(h_bf16, w_ref, b_ref):
        # bf16 x bf16 -> f32 accumulation on the MXU, bias add in f32 on VPU.
        return jnp.dot(h_bf16, w_ref[...],
                       preferred_element_type=jnp.float32) + b_ref[...]

    def to_bf16(h):
        return h.astype(jnp.bfloat16)

    x = x_ref[...]                                      # bf16 [tile_b, F_pad]

    # inputBlock: Linear + ReLU
    h = jnp.maximum(lin(x, wi_ref, bi_ref), 0.0)        # f32 [tile_b, H_pad]

    # Block1 (Linear+ReLU, Linear+ReLU) + residual (folded into last pass)
    res = h
    h = jnp.maximum(lin(to_bf16(h), w1a_ref, b1a_ref), 0.0)
    h = jnp.maximum(lin(to_bf16(h), w1b_ref, b1b_ref), 0.0) + res

    # Block2 (Linear+ReLU, Linear+ReLU) + residual
    res = h
    h = jnp.maximum(lin(to_bf16(h), w2a_ref, b2a_ref), 0.0)
    h = jnp.maximum(lin(to_bf16(h), w2b_ref, b2b_ref), 0.0) + res

    # outputBlock: Linear, no activation; lane-dense (128-multiple) store.
    o_ref[...] = lin(to_bf16(h), wo_ref, bo_ref).astype(o_ref.dtype)


def _pad2d(a, rows, cols):
    return jnp.pad(a, ((0, rows - a.shape[0]), (0, cols - a.shape[1])))


def linear_model_forward(x, params, *, tile_b=None):
    """x: [B, S0, S1] float32. Returns [B, S0, S1] float32."""
    B, S0, S1 = x.shape
    n_features = S0 * S1

    (wi, bi), (w1a, b1a), (w1b, b1b), (w2a, b2a), (w2b, b2b), (wo, bo) = params
    hidden = wi.shape[1]
    out_planes = wo.shape[1]
    assert out_planes == n_features, "reshape back requires out_planes == S0*S1"

    if tile_b is None:
        tile_b = _choose_tile_b(B)
    b_pad = _round_up(B, tile_b)           # pad batch instead of asserting divisibility
    f_pad = _round_up(n_features, 128)     # lane-dense input features
    h_pad = _round_up(hidden, 128)         # lane-dense hidden features
    o_pad = _round_up(out_planes, 128)     # lane-dense output store

    # Zero-padding: pad rows/cols contribute nothing to the dots and stay zero
    # through bias / ReLU / residual, so results are unchanged after slicing.
    x_p = _pad2d(x.reshape(B, n_features), b_pad, f_pad).astype(jnp.bfloat16)
    wi_p = _pad2d(wi, f_pad, h_pad).astype(jnp.bfloat16)
    w1a_p = _pad2d(w1a, h_pad, h_pad).astype(jnp.bfloat16)
    w1b_p = _pad2d(w1b, h_pad, h_pad).astype(jnp.bfloat16)
    w2a_p = _pad2d(w2a, h_pad, h_pad).astype(jnp.bfloat16)
    w2b_p = _pad2d(w2b, h_pad, h_pad).astype(jnp.bfloat16)
    wo_p = _pad2d(wo, h_pad, o_pad).astype(jnp.bfloat16)
    bi_p = _pad2d(bi, 1, h_pad)
    b1a_p = _pad2d(b1a, 1, h_pad)
    b1b_p = _pad2d(b1b, 1, h_pad)
    b2a_p = _pad2d(b2a, 1, h_pad)
    b2b_p = _pad2d(b2b, 1, h_pad)
    bo_p = _pad2d(bo, 1, o_pad)

    weights = [wi_p, bi_p, w1a_p, b1a_p, w1b_p, b1b_p,
               w2a_p, b2a_p, w2b_p, b2b_p, wo_p, bo_p]

    def resident_spec(a):
        # Weights/biases: same block every grid step -> stay resident in VMEM.
        # (For much larger linear_size, add pipeline_mode=pl.Buffered(1) and/or
        # raise vmem_limit_bytes; bf16 weights already halve the footprint and
        # total well under 1 MiB at these sizes.)
        return pl.BlockSpec(a.shape, lambda i: (0,) * a.ndim)

    in_specs = [pl.BlockSpec((tile_b, f_pad), lambda i: (i, 0))] + \
               [resident_spec(a) for a in weights]
    out_spec = pl.BlockSpec((tile_b, o_pad), lambda i: (i, 0))

    flops = 2 * b_pad * (f_pad * h_pad + 4 * h_pad * h_pad + h_pad * o_pad)
    bytes_accessed = (
        int(x_p.size) * 2
        + sum(int(a.size) * a.dtype.itemsize for a in weights)
        + b_pad * o_pad * 4
    )
    cost = pl.CostEstimate(flops=int(flops), transcendentals=0,
                           bytes_accessed=int(bytes_accessed))

    out2d = pl.pallas_call(
        _linear_model_kernel,
        out_shape=jax.ShapeDtypeStruct((b_pad, o_pad), jnp.float32),
        grid=(b_pad // tile_b,),
        in_specs=in_specs,
        out_specs=out_spec,
        compiler_params=pltpu.CompilerParams(
            dimension_semantics=("parallel",),
        ),
        cost_estimate=cost,
    )(x_p, *weights)

    return out2d[:B, :out_planes].reshape(B, S0, S1)


def init_params(key, in_planes, out_planes, linear_size):
    """Deterministic init. Weights stored as [in, out] (transposed vs torch),
    biases as [1, out]; all float32 (the wrapper casts weights to bf16)."""
    dims = [
        (in_planes, linear_size),    # inputBlock
        (linear_size, linear_size),  # Block1 a
        (linear_size, linear_size),  # Block1 b
        (linear_size, linear_size),  # Block2 a
        (linear_size, linear_size),  # Block2 b
        (linear_size, out_planes),   # outputBlock
    ]
    params = []
    for fan_in, fan_out in dims:
        key, kw, kb = jax.random.split(key, 3)
        bound = 1.0 / jnp.sqrt(fan_in)
        w = jax.random.uniform(kw, (fan_in, fan_out), jnp.float32, -bound, bound)
        b = jax.random.uniform(kb, (1, fan_out), jnp.float32, -bound, bound)
        params.append((w, b))
    return params


def _reference_forward(x, params, *, mxu_dtype=jnp.bfloat16):
    """Pure-JAX reference with the same math as the kernel (matmul inputs cast
    to `mxu_dtype`, f32 accumulation). Pass mxu_dtype=jnp.float32 for a
    full-precision reference."""
    B, S0, S1 = x.shape
    h = x.reshape(B, S0 * S1)
    (wi, bi), (w1a, b1a), (w1b, b1b), (w2a, b2a), (w2b, b2b), (wo, bo) = params

    def lin(h, w, b):
        return jnp.dot(h.astype(mxu_dtype), w.astype(mxu_dtype),
                       preferred_element_type=jnp.float32) + b

    h = jnp.maximum(lin(h, wi, bi), 0.0)
    r = h
    h = jnp.maximum(lin(h, w1a, b1a), 0.0)
    h = jnp.maximum(lin(h, w1b, b1b), 0.0) + r
    r = h
    h = jnp.maximum(lin(h, w2a, b2a), 0.0)
    h = jnp.maximum(lin(h, w2b, b2b), 0.0) + r
    h = lin(h, wo, bo)
    return h.reshape(B, S0, S1)


if __name__ == "__main__":
    # Small shapes: x is [batch=8, S0=4, S1=16] -> in_planes = out_planes = 64,
    # hidden linear_size = 128.
    B, S0, S1 = 8, 4, 16
    in_planes = out_planes = S0 * S1
    linear_size = 128

    key = jax.random.PRNGKey(0)
    key, kx = jax.random.split(key)
    x = jax.random.normal(kx, (B, S0, S1), jnp.float32)
    params = init_params(key, in_planes, out_planes, linear_size)

    out = jax.block_until_ready(linear_model_forward(x, params))
    assert out.shape == (B, S0, S1)

    ref_same_math = _reference_forward(x, params)                        # bf16 MXU math
    ref_f32 = _reference_forward(x, params, mxu_dtype=jnp.float32)       # full precision
    assert jnp.allclose(out, ref_same_math, atol=1e-2, rtol=1e-2), \
        "mismatch vs bf16-math reference"
    assert jnp.allclose(out, ref_f32, atol=1e-1, rtol=1e-1), \
        "mismatch vs f32 reference"

    print("KERNEL_OK")
</pallas_src>

<mosaic_0001>
module attributes {stable_mosaic.version = 11 : i64} {
  func.func @_linear_model_kernel(%arg0: i32, %arg1: memref<8x128xbf16, #tpu.memory_space<vmem>>, %arg2: memref<128x128xbf16, #tpu.memory_space<vmem>>, %arg3: memref<1x128xf32, #tpu.memory_space<vmem>>, %arg4: memref<128x128xbf16, #tpu.memory_space<vmem>>, %arg5: memref<1x128xf32, #tpu.memory_space<vmem>>, %arg6: memref<128x128xbf16, #tpu.memory_space<vmem>>, %arg7: memref<1x128xf32, #tpu.memory_space<vmem>>, %arg8: memref<128x128xbf16, #tpu.memory_space<vmem>>, %arg9: memref<1x128xf32, #tpu.memory_space<vmem>>, %arg10: memref<128x128xbf16, #tpu.memory_space<vmem>>, %arg11: memref<1x128xf32, #tpu.memory_space<vmem>>, %arg12: memref<128x128xbf16, #tpu.memory_space<vmem>>, %arg13: memref<1x128xf32, #tpu.memory_space<vmem>>, %arg14: memref<8x128xf32, #tpu.memory_space<vmem>>) attributes {dimension_semantics = [#tpu.dimension_semantics<parallel>], iteration_bounds = array<i64: 1>, scalar_prefetch = 0 : i64, scratch_operands = 0 : i64, tpu.core_type = #tpu.core_type<tc>, window_params = [{transform_indices = @transform_0, window_bounds = array<i64: 8, 128>}, {pipeline_mode = #tpu.pipeline_mode<synchronous>, transform_indices = @transform_1, window_bounds = array<i64: 128, 128>}, {pipeline_mode = #tpu.pipeline_mode<synchronous>, transform_indices = @transform_2, window_bounds = array<i64: 1, 128>}, {pipeline_mode = #tpu.pipeline_mode<synchronous>, transform_indices = @transform_3, window_bounds = array<i64: 128, 128>}, {pipeline_mode = #tpu.pipeline_mode<synchronous>, transform_indices = @transform_4, window_bounds = array<i64: 1, 128>}, {pipeline_mode = #tpu.pipeline_mode<synchronous>, transform_indices = @transform_5, window_bounds = array<i64: 128, 128>}, {pipeline_mode = #tpu.pipeline_mode<synchronous>, transform_indices = @transform_6, window_bounds = array<i64: 1, 128>}, {pipeline_mode = #tpu.pipeline_mode<synchronous>, transform_indices = @transform_7, window_bounds = array<i64: 128, 128>}, {pipeline_mode = #tpu.pipeline_mode<synchronous>, transform_indices = @transform_8, window_bounds = array<i64: 1, 128>}, {pipeline_mode = #tpu.pipeline_mode<synchronous>, transform_indices = @transform_9, window_bounds = array<i64: 128, 128>}, {pipeline_mode = #tpu.pipeline_mode<synchronous>, transform_indices = @transform_10, window_bounds = array<i64: 1, 128>}, {pipeline_mode = #tpu.pipeline_mode<synchronous>, transform_indices = @transform_11, window_bounds = array<i64: 128, 128>}, {pipeline_mode = #tpu.pipeline_mode<synchronous>, transform_indices = @transform_12, window_bounds = array<i64: 1, 128>}, {transform_indices = @transform_13, window_bounds = array<i64: 8, 128>}]} {
    %c0 = arith.constant 0 : index
    %c0_0 = arith.constant 0 : index
    %0 = vector.load %arg1[%c0, %c0_0] : memref<8x128xbf16, #tpu.memory_space<vmem>>, vector<8x128xbf16>
    %c0_1 = arith.constant 0 : index
    %c0_2 = arith.constant 0 : index
    %1 = vector.load %arg2[%c0_1, %c0_2] : memref<128x128xbf16, #tpu.memory_space<vmem>>, vector<128x128xbf16>
    %cst = arith.constant dense<0.000000e+00> : vector<8x128xf32>
    %2 = tpu.matmul %0, %1, %cst {dimension_numbers = #tpu.dot_dimension_numbers<[1], [0], [0], [1], [0, 0, 1, 1], [], []>} : vector<8x128xbf16>, vector<128x128xbf16>, vector<8x128xf32> -> vector<8x128xf32>
    %c0_3 = arith.constant 0 : index
    %c0_4 = arith.constant 0 : index
    %3 = vector.load %arg3[%c0_3, %c0_4] : memref<1x128xf32, #tpu.memory_space<vmem>>, vector<1x128xf32>
    %4 = vector.broadcast %3 : vector<1x128xf32> to vector<8x128xf32>
    %5 = arith.addf %2, %4 : vector<8x128xf32>
    %cst_5 = arith.constant 0.000000e+00 : f32
    %6 = vector.broadcast %cst_5 : f32 to vector<8x128xf32>
    %7 = arith.maximumf %5, %6 : vector<8x128xf32>
    %8 = arith.truncf %7 : vector<8x128xf32> to vector<8x128xbf16>
    %c0_6 = arith.constant 0 : index
    %c0_7 = arith.constant 0 : index
    %9 = vector.load %arg4[%c0_6, %c0_7] : memref<128x128xbf16, #tpu.memory_space<vmem>>, vector<128x128xbf16>
    %cst_8 = arith.constant dense<0.000000e+00> : vector<8x128xf32>
    %10 = tpu.matmul %8, %9, %cst_8 {dimension_numbers = #tpu.dot_dimension_numbers<[1], [0], [0], [1], [0, 0, 1, 1], [], []>} : vector<8x128xbf16>, vector<128x128xbf16>, vector<8x128xf32> -> vector<8x128xf32>
    %c0_9 = arith.constant 0 : index
    %c0_10 = arith.constant 0 : index
    %11 = vector.load %arg5[%c0_9, %c0_10] : memref<1x128xf32, #tpu.memory_space<vmem>>, vector<1x128xf32>
    %12 = vector.broadcast %11 : vector<1x128xf32> to vector<8x128xf32>
    %13 = arith.addf %10, %12 : vector<8x128xf32>
    %cst_11 = arith.constant 0.000000e+00 : f32
    %14 = vector.broadcast %cst_11 : f32 to vector<8x128xf32>
    %15 = arith.maximumf %13, %14 : vector<8x128xf32>
    %16 = arith.truncf %15 : vector<8x128xf32> to vector<8x128xbf16>
    %c0_12 = arith.constant 0 : index
    %c0_13 = arith.constant 0 : index
    %17 = vector.load %arg6[%c0_12, %c0_13] : memref<128x128xbf16, #tpu.memory_space<vmem>>, vector<128x128xbf16>
    %cst_14 = arith.constant dense<0.000000e+00> : vector<8x128xf32>
    %18 = tpu.matmul %16, %17, %cst_14 {dimension_numbers = #tpu.dot_dimension_numbers<[1], [0], [0], [1], [0, 0, 1, 1], [], []>} : vector<8x128xbf16>, vector<128x128xbf16>, vector<8x128xf32> -> vector<8x128xf32>
    %c0_15 = arith.constant 0 : index
    %c0_16 = arith.constant 0 : index
    %19 = vector.load %arg7[%c0_15, %c0_16] : memref<1x128xf32, #tpu.memory_space<vmem>>, vector<1x128xf32>
    %20 = vector.broadcast %19 : vector<1x128xf32> to vector<8x128xf32>
    %21 = arith.addf %18, %20 : vector<8x128xf32>
    %cst_17 = arith.constant 0.000000e+00 : f32
    %22 = vector.broadcast %cst_17 : f32 to vector<8x128xf32>
    %23 = arith.maximumf %21, %22 : vector<8x128xf32>
    %24 = arith.addf %23, %7 : vector<8x128xf32>
    %25 = arith.truncf %24 : vector<8x128xf32> to vector<8x128xbf16>
    %c0_18 = arith.constant 0 : index
    %c0_19 = arith.constant 0 : index
    %26 = vector.load %arg8[%c0_18, %c0_19] : memref<128x128xbf16, #tpu.memory_space<vmem>>, vector<128x128xbf16>
    %cst_20 = arith.constant dense<0.000000e+00> : vector<8x128xf32>
    %27 = tpu.matmul %25, %26, %cst_20 {dimension_numbers = #tpu.dot_dimension_numbers<[1], [0], [0], [1], [0, 0, 1, 1], [], []>} : vector<8x128xbf16>, vector<128x128xbf16>, vector<8x128xf32> -> vector<8x128xf32>
    %c0_21 = arith.constant 0 : index
    %c0_22 = arith.constant 0 : index
    %28 = vector.load %arg9[%c0_21, %c0_22] : memref<1x128xf32, #tpu.memory_space<vmem>>, vector<1x128xf32>
    %29 = vector.broadcast %28 : vector<1x128xf32> to vector<8x128xf32>
    %30 = arith.addf %27, %29 : vector<8x128xf32>
    %cst_23 = arith.constant 0.000000e+00 : f32
    %31 = vector.broadcast %cst_23 : f32 to vector<8x128xf32>
    %32 = arith.maximumf %30, %31 : vector<8x128xf32>
    %33 = arith.truncf %32 : vector<8x128xf32> to vector<8x128xbf16>
    %c0_24 = arith.constant 0 : index
    %c0_25 = arith.constant 0 : index
    %34 = vector.load %arg10[%c0_24, %c0_25] : memref<128x128xbf16, #tpu.memory_space<vmem>>, vector<128x128xbf16>
    %cst_26 = arith.constant dense<0.000000e+00> : vector<8x128xf32>
    %35 = tpu.matmul %33, %34, %cst_26 {dimension_numbers = #tpu.dot_dimension_numbers<[1], [0], [0], [1], [0, 0, 1, 1], [], []>} : vector<8x128xbf16>, vector<128x128xbf16>, vector<8x128xf32> -> vector<8x128xf32>
    %c0_27 = arith.constant 0 : index
    %c0_28 = arith.constant 0 : index
    %36 = vector.load %arg11[%c0_27, %c0_28] : memref<1x128xf32, #tpu.memory_space<vmem>>, vector<1x128xf32>
    %37 = vector.broadcast %36 : vector<1x128xf32> to vector<8x128xf32>
    %38 = arith.addf %35, %37 : vector<8x128xf32>
    %cst_29 = arith.constant 0.000000e+00 : f32
    %39 = vector.broadcast %cst_29 : f32 to vector<8x128xf32>
    %40 = arith.maximumf %38, %39 : vector<8x128xf32>
    %41 = arith.addf %40, %24 : vector<8x128xf32>
    %42 = arith.truncf %41 : vector<8x128xf32> to vector<8x128xbf16>
    %c0_30 = arith.constant 0 : index
    %c0_31 = arith.constant 0 : index
    %43 = vector.load %arg12[%c0_30, %c0_31] : memref<128x128xbf16, #tpu.memory_space<vmem>>, vector<128x128xbf16>
    %cst_32 = arith.constant dense<0.000000e+00> : vector<8x128xf32>
    %44 = tpu.matmul %42, %43, %cst_32 {dimension_numbers = #tpu.dot_dimension_numbers<[1], [0], [0], [1], [0, 0, 1, 1], [], []>} : vector<8x128xbf16>, vector<128x128xbf16>, vector<8x128xf32> -> vector<8x128xf32>
    %c0_33 = arith.constant 0 : index
    %c0_34 = arith.constant 0 : index
    %45 = vector.load %arg13[%c0_33, %c0_34] : memref<1x128xf32, #tpu.memory_space<vmem>>, vector<1x128xf32>
    %46 = vector.broadcast %45 : vector<1x128xf32> to vector<8x128xf32>
    %47 = arith.addf %44, %46 : vector<8x128xf32>
    %c0_35 = arith.constant 0 : index
    %c0_36 = arith.constant 0 : index
    %48 = vector.load %arg14[%c0_35, %c0_36] : memref<8x128xf32, #tpu.memory_space<vmem>>, vector<8x128xf32>
    tpu.vector_store %arg14[%c0_35, %c0_36], %47 {strides = array<i32>} : memref<8x128xf32, #tpu.memory_space<vmem>>, vector<8x128xf32>,
    return
  }
  func.func @transform_0(%arg0: i32) -> (i32, i32) {
    %c0_i32 = arith.constant 0 : i32
    %c0_i32_0 = arith.constant 0 : i32
    return %arg0, %c0_i32 : i32, i32
  }
  func.func @transform_1(%arg0: i32) -> (i32, i32) {
    %c0_i32 = arith.constant 0 : i32
    %c0_i32_0 = arith.constant 0 : i32
    %c0_i32_1 = arith.constant 0 : i32
    return %c0_i32, %c0_i32_0 : i32, i32
  }
  func.func @transform_2(%arg0: i32) -> (i32, i32) {
    %c0_i32 = arith.constant 0 : i32
    %c0_i32_0 = arith.constant 0 : i32
    %c0_i32_1 = arith.constant 0 : i32
    return %c0_i32, %c0_i32_0 : i32, i32
  }
  func.func @transform_3(%arg0: i32) -> (i32, i32) {
    %c0_i32 = arith.constant 0 : i32
    %c0_i32_0 = arith.constant 0 : i32
    %c0_i32_1 = arith.constant 0 : i32
    return %c0_i32, %c0_i32_0 : i32, i32
  }
  func.func @transform_4(%arg0: i32) -> (i32, i32) {
    %c0_i32 = arith.constant 0 : i32
    %c0_i32_0 = arith.constant 0 : i32
    %c0_i32_1 = arith.constant 0 : i32
    return %c0_i32, %c0_i32_0 : i32, i32
  }
  func.func @transform_5(%arg0: i32) -> (i32, i32) {
    %c0_i32 = arith.constant 0 : i32
    %c0_i32_0 = arith.constant 0 : i32
    %c0_i32_1 = arith.constant 0 : i32
    return %c0_i32, %c0_i32_0 : i32, i32
  }
  func.func @transform_6(%arg0: i32) -> (i32, i32) {
    %c0_i32 = arith.constant 0 : i32
    %c0_i32_0 = arith.constant 0 : i32
    %c0_i32_1 = arith.constant 0 : i32
    return %c0_i32, %c0_i32_0 : i32, i32
  }
  func.func @transform_7(%arg0: i32) -> (i32, i32) {
    %c0_i32 = arith.constant 0 : i32
    %c0_i32_0 = arith.constant 0 : i32
    %c0_i32_1 = arith.constant 0 : i32
    return %c0_i32, %c0_i32_0 : i32, i32
  }
  func.func @transform_8(%arg0: i32) -> (i32, i32) {
    %c0_i32 = arith.constant 0 : i32
    %c0_i32_0 = arith.constant 0 : i32
    %c0_i32_1 = arith.constant 0 : i32
    return %c0_i32, %c0_i32_0 : i32, i32
  }
  func.func @transform_9(%arg0: i32) -> (i32, i32) {
    %c0_i32 = arith.constant 0 : i32
    %c0_i32_0 = arith.constant 0 : i32
    %c0_i32_1 = arith.constant 0 : i32
    return %c0_i32, %c0_i32_0 : i32, i32
  }
  func.func @transform_10(%arg0: i32) -> (i32, i32) {
    %c0_i32 = arith.constant 0 : i32
    %c0_i32_0 = arith.constant 0 : i32
    %c0_i32_1 = arith.constant 0 : i32
    return %c0_i32, %c0_i32_0 : i32, i32
  }
  func.func @transform_11(%arg0: i32) -> (i32, i32) {
    %c0_i32 = arith.constant 0 : i32
    %c0_i32_0 = arith.constant 0 : i32
    %c0_i32_1 = arith.constant 0 : i32
    return %c0_i32, %c0_i32_0 : i32, i32
  }
  func.func @transform_12(%arg0: i32) -> (i32, i32) {
    %c0_i32 = arith.constant 0 : i32
    %c0_i32_0 = arith.constant 0 : i32
    %c0_i32_1 = arith.constant 0 : i32
    return %c0_i32, %c0_i32_0 : i32, i32
  }
  func.func @transform_13(%arg0: i32) -> (i32, i32) {
    %c0_i32 = arith.constant 0 : i32
    %c0_i32_0 = arith.constant 0 : i32
    return %arg0, %c0_i32 : i32, i32
  }
}

</mosaic_0001>

<llo_original>
// kernel: tpu_custom_call.1
$region0: #{tpu_custom_call.1}
  #allocation0 [shape = 'u32[]', space=smem, size = 0x4, offset = 0x4, fixed_abs, tag = 'smem constant byte address 0x4 - core index']
  #allocation1 [shape = 'u32[144,128]{1,0:T(1,128)}', space=vmem, size = 0x12000, scoped, tag = 'internal scratch']
  %s0 = inlined_call_operand.hbm [shape: bf16[8,128], index: 0, kind: input, shape index: {}]
  %s1 = inlined_call_operand.hbm [shape: bf16[128,128], index: 1, kind: input, shape index: {}]
  %s2 = inlined_call_operand.vmem [shape: f32[1,128], index: 2, kind: input, shape index: {}]
  %s3 = inlined_call_operand.hbm [shape: bf16[128,128], index: 3, kind: input, shape index: {}]
  %s4 = inlined_call_operand.vmem [shape: f32[1,128], index: 4, kind: input, shape index: {}]
  %s5 = inlined_call_operand.hbm [shape: bf16[128,128], index: 5, kind: input, shape index: {}]
  %s6 = inlined_call_operand.vmem [shape: f32[1,128], index: 6, kind: input, shape index: {}]
  %s7 = inlined_call_operand.hbm [shape: bf16[128,128], index: 7, kind: input, shape index: {}]
  %s8 = inlined_call_operand.vmem [shape: f32[1,128], index: 8, kind: input, shape index: {}]
  %s9 = inlined_call_operand.hbm [shape: bf16[128,128], index: 9, kind: input, shape index: {}]
  %s10 = inlined_call_operand.vmem [shape: f32[1,128], index: 10, kind: input, shape index: {}]
  %s11 = inlined_call_operand.hbm [shape: bf16[128,128], index: 11, kind: input, shape index: {}]
  %s12 = inlined_call_operand.vmem [shape: f32[1,128], index: 12, kind: input, shape index: {}]
  %s13 = inlined_call_operand.hbm [shape: f32[8,128], index: 13, kind: output, shape index: {}]
  %s14 = sld [smem:[#allocation0]]
  $region90: #{tpu_custom_call.1} parent=0
    _
  %s16 = ssub.s32 1, %s14
  %s17 = scalar_select 0, %s16, %s14
  $region1: #{tpu_custom_call.1} parent=0
    #allocation2 [shape = 'u8[2048]{0}', space=vmem, size = 0x800, scoped, tag = 'input window, operand 0, single buffered']
    #allocation3 [shape = 's32[1]{0}', space=sflag, size = 0x4, scoped, tag = 'scoped memory for tpu_custom_call.1']
    #allocation4 [shape = 's32[1]{0}', space=sflag, size = 0x4, scoped, tag = 'scoped memory for tpu_custom_call.1']
    #allocation5 [shape = 'u8[32768]{0}', space=vmem, size = 0x8000, scoped, tag = 'input window, operand 1, single buffered']
    #allocation6 [shape = 's32[1]{0}', space=sflag, size = 0x4, scoped, tag = 'scoped memory for tpu_custom_call.1']
    #allocation7 [shape = 'u8[32768]{0}', space=vmem, size = 0x8000, scoped, tag = 'input window, operand 3, single buffered']
    #allocation8 [shape = 'u8[32768]{0}', space=vmem, size = 0x8000, scoped, tag = 'input window, operand 5, single buffered']
    #allocation9 [shape = 's32[1]{0}', space=sflag, size = 0x4, scoped, tag = 'scoped memory for tpu_custom_call.1']
    #allocation10 [shape = 'u8[32768]{0}', space=vmem, size = 0x8000, scoped, tag = 'input window, operand 7, single buffered']
    #allocation11 [shape = 'u8[32768]{0}', space=vmem, size = 0x8000, scoped, tag = 'input window, operand 9, single buffered']
    #allocation12 [shape = 's32[1]{0}', space=sflag, size = 0x4, scoped, tag = 'scoped memory for tpu_custom_call.1']
    #allocation13 [shape = 'u8[32768]{0}', space=vmem, size = 0x8000, scoped, tag = 'input window, operand 11, single buffered']
    #allocation14 [shape = 'u8[4096]{0}', space=vmem, size = 0x1000, scoped, tag = 'output window, operand 0, single buffered']
    %18 = vsyncpa [#allocation3], 0
    %19 = vsyncpa [#allocation6], 0
    %20 = vsyncpa [#allocation9], 0
    %21 = vsyncpa [#allocation12], 0
    %22 = vsyncpa [#allocation4], 0
    // Predicated region
    $region2: #{tpu_custom_call.1} parent=1 // pred_check
      _
    $region3: #{tpu_custom_call.1} parent=1 // pred_check_branch
      %24 = sbr.rel (0) target = $region5
    $region4: #{tpu_custom_call.1} parent=1 // pred_region
      %s26 = ssub.s32 64, 64
      %27 = vsyncadd [#allocation3], %s26
      %s29 = sshll.u32 [#allocation2], 4
      %s30 = int_to_ptr.vmem [resolvable:$true] %s29
      %32 = dma.hbm_to_vmem [thread:$0]  %s0, 64, %s30, [#allocation3]
    $region5: #{tpu_custom_call.1} parent=1 // pred_fallthru
      _
    // Predicated region
    $region6: #{tpu_custom_call.1} parent=1 // pred_check
      _
    $region7: #{tpu_custom_call.1} parent=1 // pred_check_branch
      %34 = sbr.rel (0) target = $region9
    $region8: #{tpu_custom_call.1} parent=1 // pred_region
      %s36 = ssub.s32 1024, 1024
      %37 = vsyncadd [#allocation6], %s36
      %s38 = sshll.u32 [#allocation5], 4
      %s39 = int_to_ptr.vmem [resolvable:$true] %s38
      %44 = dma.hbm_to_vmem [thread:$0]  %s1, 1024, %s39, [#allocation6], 64, 64, 4
    $region9: #{tpu_custom_call.1} parent=1 // pred_fallthru
      _
    // Predicated region
    $region10: #{tpu_custom_call.1} parent=1 // pred_check
      _
    $region11: #{tpu_custom_call.1} parent=1 // pred_check_branch
      %46 = sbr.rel (0) target = $region13
    $region12: #{tpu_custom_call.1} parent=1 // pred_region
      _
    $region13: #{tpu_custom_call.1} parent=1 // pred_fallthru
      _
    // Predicated region
    $region14: #{tpu_custom_call.1} parent=1 // pred_check
      _
    $region15: #{tpu_custom_call.1} parent=1 // pred_check_branch
      %48 = sbr.rel (0) target = $region17
    $region16: #{tpu_custom_call.1} parent=1 // pred_region
      %s50 = ssub.s32 1024, 1024
      %51 = vsyncadd [#allocation6], %s50
      %s52 = sshll.u32 [#allocation7], 4
      %s53 = int_to_ptr.vmem [resolvable:$true] %s52
      %58 = dma.hbm_to_vmem [thread:$0]  %s3, 1024, %s53, [#allocation6], 64, 64, 4
    $region17: #{tpu_custom_call.1} parent=1 // pred_fallthru
      _
    // Predicated region
    $region18: #{tpu_custom_call.1} parent=1 // pred_check
      _
    $region19: #{tpu_custom_call.1} parent=1 // pred_check_branch
      %60 = sbr.rel (0) target = $region21
    $region20: #{tpu_custom_call.1} parent=1 // pred_region
      _
    $region21: #{tpu_custom_call.1} parent=1 // pred_fallthru
      _
    // Predicated region
    $region22: #{tpu_custom_call.1} parent=1 // pred_check
      _
    $region23: #{tpu_custom_call.1} parent=1 // pred_check_branch
      %62 = sbr.rel (0) target = $region25
    $region24: #{tpu_custom_call.1} parent=1 // pred_region
      %s64 = ssub.s32 1024, 1024
      %65 = vsyncadd [#allocation9], %s64
      %s66 = sshll.u32 [#allocation8], 4
      %s67 = int_to_ptr.vmem [resolvable:$true] %s66
      %72 = dma.hbm_to_vmem [thread:$0]  %s5, 1024, %s67, [#allocation9], 64, 64, 4
    $region25: #{tpu_custom_call.1} parent=1 // pred_fallthru
      _
    // Predicated region
    $region26: #{tpu_custom_call.1} parent=1 // pred_check
      _
    $region27: #{tpu_custom_call.1} parent=1 // pred_check_branch
      %74 = sbr.rel (0) target = $region29
    $region28: #{tpu_custom_call.1} parent=1 // pred_region
      _
    $region29: #{tpu_custom_call.1} parent=1 // pred_fallthru
      _
    // Predicated region
    $region30: #{tpu_custom_call.1} parent=1 // pred_check
      _
    $region31: #{tpu_custom_call.1} parent=1 // pred_check_branch
      %76 = sbr.rel (0) target = $region33
    $region32: #{tpu_custom_call.1} parent=1 // pred_region
      %s78 = ssub.s32 1024, 1024
      %79 = vsyncadd [#allocation9], %s78
      %s80 = sshll.u32 [#allocation10], 4
      %s81 = int_to_ptr.vmem [resolvable:$true] %s80
      %86 = dma.hbm_to_vmem [thread:$0]  %s7, 1024, %s81, [#allocation9], 64, 64, 4
    $region33: #{tpu_custom_call.1} parent=1 // pred_fallthru
      _
    // Predicated region
    $region34: #{tpu_custom_call.1} parent=1 // pred_check
      _
    $region35: #{tpu_custom_call.1} parent=1 // pred_check_branch
      %88 = sbr.rel (0) target = $region37
    $region36: #{tpu_custom_call.1} parent=1 // pred_region
      _
    $region37: #{tpu_custom_call.1} parent=1 // pred_fallthru
      _
    // Predicated region
    $region38: #{tpu_custom_call.1} parent=1 // pred_check
      _
    $region39: #{tpu_custom_call.1} parent=1 // pred_check_branch
      %90 = sbr.rel (0) target = $region41
    $region40: #{tpu_custom_call.1} parent=1 // pred_region
      %s92 = ssub.s32 1024, 1024
      %93 = vsyncadd [#allocation12], %s92
      %s94 = sshll.u32 [#allocation11], 4
      %s95 = int_to_ptr.vmem [resolvable:$true] %s94
      %100 = dma.hbm_to_vmem [thread:$0]  %s9, 1024, %s95, [#allocation12], 64, 64, 4
    $region41: #{tpu_custom_call.1} parent=1 // pred_fallthru
      _
    // Predicated region
    $region42: #{tpu_custom_call.1} parent=1 // pred_check
      _
    $region43: #{tpu_custom_call.1} parent=1 // pred_check_branch
      %102 = sbr.rel (0) target = $region45
    $region44: #{tpu_custom_call.1} parent=1 // pred_region
      _
    $region45: #{tpu_custom_call.1} parent=1 // pred_fallthru
      _
    // Predicated region
    $region46: #{tpu_custom_call.1} parent=1 // pred_check
      _
    $region47: #{tpu_custom_call.1} parent=1 // pred_check_branch
      %104 = sbr.rel (0) target = $region49
    $region48: #{tpu_custom_call.1} parent=1 // pred_region
      %s106 = ssub.s32 1024, 1024
      %107 = vsyncadd [#allocation12], %s106
      %s108 = sshll.u32 [#allocation13], 4
      %s109 = int_to_ptr.vmem [resolvable:$true] %s108
      %114 = dma.hbm_to_vmem [thread:$0]  %s11, 1024, %s109, [#allocation12], 64, 64, 4
    $region49: #{tpu_custom_call.1} parent=1 // pred_fallthru
      _
    // Predicated region
    $region50: #{tpu_custom_call.1} parent=1 // pred_check
      _
    $region51: #{tpu_custom_call.1} parent=1 // pred_check_branch
      %116 = sbr.rel (0) target = $region53
    $region52: #{tpu_custom_call.1} parent=1 // pred_region
      _
    $region53: #{tpu_custom_call.1} parent=1 // pred_fallthru
      _
    // Predicated region
    $region54: #{tpu_custom_call.1} parent=1 // pred_check
      _
    $region55: #{tpu_custom_call.1} parent=1 // pred_check_branch
      %118 = sbr.rel (0) target = $region57
    $region56: #{tpu_custom_call.1} parent=1 // pred_region
      %119 = dma.done [#allocation3], 64
    $region57: #{tpu_custom_call.1} parent=1 // pred_fallthru
      _
    // Predicated region
    $region58: #{tpu_custom_call.1} parent=1 // pred_check
      _
    $region59: #{tpu_custom_call.1} parent=1 // pred_check_branch
      %121 = sbr.rel (0) target = $region61
    $region60: #{tpu_custom_call.1} parent=1 // pred_region
      %122 = dma.done [#allocation6], 1024
    $region61: #{tpu_custom_call.1} parent=1 // pred_fallthru
      _
    // Predicated region
    $region62: #{tpu_custom_call.1} parent=1 // pred_check
      _
    $region63: #{tpu_custom_call.1} parent=1 // pred_check_branch
      %124 = sbr.rel (0) target = $region65
    $region64: #{tpu_custom_call.1} parent=1 // pred_region
      %125 = dma.done [#allocation6], 1024
    $region65: #{tpu_custom_call.1} parent=1 // pred_fallthru
      _
    // Predicated region
    $region66: #{tpu_custom_call.1} parent=1 // pred_check
      _
    $region67: #{tpu_custom_call.1} parent=1 // pred_check_branch
      %127 = sbr.rel (0) target = $region69
    $region68: #{tpu_custom_call.1} parent=1 // pred_region
      %128 = dma.done [#allocation9], 1024
    $region69: #{tpu_custom_call.1} parent=1 // pred_fallthru
      _
    // Predicated region
    $region70: #{tpu_custom_call.1} parent=1 // pred_check
      _
    $region71: #{tpu_custom_call.1} parent=1 // pred_check_branch
      %130 = sbr.rel (0) target = $region73
    $region72: #{tpu_custom_call.1} parent=1 // pred_region
      %131 = dma.done [#allocation9], 1024
    $region73: #{tpu_custom_call.1} parent=1 // pred_fallthru
      _
    // Predicated region
    $region74: #{tpu_custom_call.1} parent=1 // pred_check
      _
    $region75: #{tpu_custom_call.1} parent=1 // pred_check_branch
      %133 = sbr.rel (0) target = $region77
    $region76: #{tpu_custom_call.1} parent=1 // pred_region
      %134 = dma.done [#allocation12], 1024
    $region77: #{tpu_custom_call.1} parent=1 // pred_fallthru
      _
    // Predicated region
    $region78: #{tpu_custom_call.1} parent=1 // pred_check
      _
    $region79: #{tpu_custom_call.1} parent=1 // pred_check_branch
      %136 = sbr.rel (0) target = $region81
    $region80: #{tpu_custom_call.1} parent=1 // pred_region
      %137 = dma.done [#allocation12], 1024
    $region81: #{tpu_custom_call.1} parent=1 // pred_fallthru
      _
    %v139 = vld [vmem:[#allocation2] sm:$0xf]
    %v140 = vld [vmem:[#allocation5] sm:$0xf]
    %v141 = vld [vmem:[#allocation5 + $0x4] sm:$0xf]
    %v142 = vld [vmem:[#allocation5 + $0x8] sm:$0xf]
    %v143 = vld [vmem:[#allocation5 + $0xc] sm:$0xf]
    %v144 = vld [vmem:[#allocation5 + $0x10] sm:$0xf]
    %v145 = vld [vmem:[#allocation5 + $0x14] sm:$0xf]
    %v146 = vld [vmem:[#allocation5 + $0x18] sm:$0xf]
    %v147 = vld [vmem:[#allocation5 + $0x1c] sm:$0xf]
    %v148 = vld [vmem:[#allocation5 + $0x20] sm:$0xf]
    %v149 = vld [vmem:[#allocation5 + $0x24] sm:$0xf]
    %v150 = vld [vmem:[#allocation5 + $0x28] sm:$0xf]
    %v151 = vld [vmem:[#allocation5 + $0x2c] sm:$0xf]
    %v152 = vld [vmem:[#allocation5 + $0x30] sm:$0xf]
    %v153 = vld [vmem:[#allocation5 + $0x34] sm:$0xf]
    %v154 = vld [vmem:[#allocation5 + $0x38] sm:$0xf]
    %v155 = vld [vmem:[#allocation5 + $0x3c] sm:$0xf]
    %v156 = vld [vmem:[%s2] sm:$0x1]
    %v158 = vlaneseq
    %v159 = vshrl.u32 %v158, 7
    %v160 = vsub.s32 0, %v159
    %v161 = vrot.slane %v156, %v160
    %v179 = vunpack.c.l.b16 %v140
    %v180 = vunpack.c.l.b16 %v141
    %v181 = vunpack.c.l.b16 %v142
    %v182 = vunpack.c.l.b16 %v143
    %v183 = vunpack.c.l.b16 %v144
    %v184 = vunpack.c.l.b16 %v145
    %v185 = vunpack.c.l.b16 %v146
    %v186 = vunpack.c.l.b16 %v147
    %v187 = vunpack.c.l.b16 %v148
    %v188 = vunpack.c.l.b16 %v149
    %v189 = vunpack.c.l.b16 %v150
    %v190 = vunpack.c.l.b16 %v151
    %v191 = vunpack.c.l.b16 %v152
    %v192 = vunpack.c.l.b16 %v153
    %v193 = vunpack.c.l.b16 %v154
    %v194 = vunpack.c.l.b16 %v155
    %v195 = vpack.c.b16 %v180, %v179
    %v196 = vpack.c.b16 %v182, %v181
    %v197 = vpack.c.b16 %v184, %v183
    %v198 = vpack.c.b16 %v186, %v185
    %v199 = vpack.c.b16 %v188, %v187
    %v200 = vpack.c.b16 %v190, %v189
    %v201 = vpack.c.b16 %v192, %v191
    %v202 = vpack.c.b16 %v194, %v193
    %211 = vmatprep.subr.bf16.mxu0 0
    %212 = vmatpush1.bf16.msra.mxu0 %v195
    %213 = vmatprep.subr.bf16.mxu0 0
    %214 = vmatpush1.bf16.msra.mxu0 %v196
    %215 = vmatprep.subr.bf16.mxu0 0
    %216 = vmatpush1.bf16.msra.mxu0 %v197
    %217 = vmatprep.subr.bf16.mxu0 0
    %218 = vmatpush1.bf16.msra.mxu0 %v198
    %219 = vmatprep.subr.bf16.mxu0 0
    %220 = vmatpush1.bf16.msra.mxu0 %v199
    %221 = vmatprep.subr.bf16.mxu0 0
    %222 = vmatpush1.bf16.msra.mxu0 %v200
    %223 = vmatprep.subr.bf16.mxu0 0
    %224 = vmatpush1.bf16.msra.mxu0 %v201
    %225 = vmatprep.subr.bf16.mxu0 0
    %226 = vmatpush1.bf16.msra.mxu0 %v202
    %227 = vmatprep.subr.bf16.mxu0 0
    %228 = vmatpush1.bf16.msra.mxu0 0
    %229 = vmatprep.subr.bf16.mxu0 0
    %230 = vmatpush1.bf16.msra.mxu0 0
    %231 = vmatprep.subr.bf16.mxu0 0
    %232 = vmatpush1.bf16.msra.mxu0 0
    %233 = vmatprep.subr.bf16.mxu0 0
    %234 = vmatpush1.bf16.msra.mxu0 0
    %235 = vmatprep.subr.bf16.mxu0 0
    %236 = vmatpush1.bf16.msra.mxu0 0
    %237 = vmatprep.subr.bf16.mxu0 0
    %238 = vmatpush1.bf16.msra.mxu0 0
    %239 = vmatprep.subr.bf16.mxu0 0
    %240 = vmatpush1.bf16.msra.mxu0 0
    %241 = vmatprep.subr.bf16.mxu0 0
    %242 = vmatpush1.bf16.msra.mxu0 0
    %243 = vmatprep.mubr.bf16.mxu0 0
    %244 = vmatmul.mubr.bf16.gmra.mrb[0].mxu0 %v139
    %v245 = vpop.f32.mrb[0].mxu0
    %v246 = vadd.f32 %v161, %v245
    %v247 = vpop.f32.mrb[0].mxu0
    %v248 = vpop.f32.mrb[0].mxu0
    %v249 = vpop.f32.mrb[0].mxu0
    %250 = vdwg.mxu0
    %v251 = vmax.f32 %v246, 0.0
    %v252 = vpack.c.bf16 %v251, %v251
    %v253 = vld [vmem:[#allocation7] sm:$0xf]
    %v254 = vld [vmem:[#allocation7 + $0x4] sm:$0xf]
    %v255 = vld [vmem:[#allocation7 + $0x8] sm:$0xf]
    %v256 = vld [vmem:[#allocation7 + $0xc] sm:$0xf]
    %v257 = vld [vmem:[#allocation7 + $0x10] sm:$0xf]
    %v258 = vld [vmem:[#allocation7 + $0x14] sm:$0xf]
    %v259 = vld [vmem:[#allocation7 + $0x18] sm:$0xf]
    %v260 = vld [vmem:[#allocation7 + $0x1c] sm:$0xf]
    %v261 = vld [vmem:[#allocation7 + $0x20] sm:$0xf]
    %v262 = vld [vmem:[#allocation7 + $0x24] sm:$0xf]
    %v263 = vld [vmem:[#allocation7 + $0x28] sm:$0xf]
    %v264 = vld [vmem:[#allocation7 + $0x2c] sm:$0xf]
    %v265 = vld [vmem:[#allocation7 + $0x30] sm:$0xf]
    %v266 = vld [vmem:[#allocation7 + $0x34] sm:$0xf]
    %v267 = vld [vmem:[#allocation7 + $0x38] sm:$0xf]
    %v268 = vld [vmem:[#allocation7 + $0x3c] sm:$0xf]
    %v269 = vld [vmem:[%s4] sm:$0x1]
    %v271 = vlaneseq
    %v272 = vshrl.u32 %v271, 7
    %v273 = vsub.s32 0, %v272
    %v274 = vrot.slane %v269, %v273
    %v292 = vunpack.c.l.b16 %v253
    %v293 = vunpack.c.l.b16 %v254
    %v294 = vunpack.c.l.b16 %v255
    %v295 = vunpack.c.l.b16 %v256
    %v296 = vunpack.c.l.b16 %v257
    %v297 = vunpack.c.l.b16 %v258
    %v298 = vunpack.c.l.b16 %v259
    %v299 = vunpack.c.l.b16 %v260
    %v300 = vunpack.c.l.b16 %v261
    %v301 = vunpack.c.l.b16 %v262
    %v302 = vunpack.c.l.b16 %v263
    %v303 = vunpack.c.l.b16 %v264
    %v304 = vunpack.c.l.b16 %v265
    %v305 = vunpack.c.l.b16 %v266
    %v306 = vunpack.c.l.b16 %v267
    %v307 = vunpack.c.l.b16 %v268
    %v308 = vpack.c.b16 %v293, %v292
    %v309 = vpack.c.b16 %v295, %v294
    %v310 = vpack.c.b16 %v297, %v296
    %v311 = vpack.c.b16 %v299, %v298
    %v312 = vpack.c.b16 %v301, %v300
    %v313 = vpack.c.b16 %v303, %v302
    %v314 = vpack.c.b16 %v305, %v304
    %v315 = vpack.c.b16 %v307, %v306
    %324 = vmatprep.subr.bf16.mxu0 0
    %325 = vmatpush1.bf16.msra.mxu0 %v308
    %326 = vmatprep.subr.bf16.mxu0 0
    %327 = vmatpush1.bf16.msra.mxu0 %v309
    %328 = vmatprep.subr.bf16.mxu0 0
    %329 = vmatpush1.bf16.msra.mxu0 %v310
    %330 = vmatprep.subr.bf16.mxu0 0
    %331 = vmatpush1.bf16.msra.mxu0 %v311
    %332 = vmatprep.subr.bf16.mxu0 0
    %333 = vmatpush1.bf16.msra.mxu0 %v312
    %334 = vmatprep.subr.bf16.mxu0 0
    %335 = vmatpush1.bf16.msra.mxu0 %v313
    %336 = vmatprep.subr.bf16.mxu0 0
    %337 = vmatpush1.bf16.msra.mxu0 %v314
    %338 = vmatprep.subr.bf16.mxu0 0
    %339 = vmatpush1.bf16.msra.mxu0 %v315
    %340 = vmatprep.subr.bf16.mxu0 0
    %341 = vmatpush1.bf16.msra.mxu0 0
    %342 = vmatprep.subr.bf16.mxu0 0
    %343 = vmatpush1.bf16.msra.mxu0 0
    %344 = vmatprep.subr.bf16.mxu0 0
    %345 = vmatpush1.bf16.msra.mxu0 0
    %346 = vmatprep.subr.bf16.mxu0 0
    %347 = vmatpush1.bf16.msra.mxu0 0
    %348 = vmatprep.subr.bf16.mxu0 0
    %349 = vmatpush1.bf16.msra.mxu0 0
    %350 = vmatprep.subr.bf16.mxu0 0
    %351 = vmatpush1.bf16.msra.mxu0 0
    %352 = vmatprep.subr.bf16.mxu0 0
    %353 = vmatpush1.bf16.msra.mxu0 0
    %354 = vmatprep.subr.bf16.mxu0 0
    %355 = vmatpush1.bf16.msra.mxu0 0
    %356 = vmatprep.mubr.bf16.mxu0 0
    %357 = vmatmul.mubr.bf16.gmra.mrb[0].mxu0 %v252
    %v358 = vpop.f32.mrb[0].mxu0
    %v359 = vadd.f32 %v274, %v358
    %v360 = vpop.f32.mrb[0].mxu0
    %v361 = vpop.f32.mrb[0].mxu0
    %v362 = vpop.f32.mrb[0].mxu0
    %363 = vdwg.mxu0
    %v364 = vmax.f32 %v359, 0.0
    %v365 = vpack.c.bf16 %v364, %v364
    %v366 = vld [vmem:[#allocation8] sm:$0xf]
    %v367 = vld [vmem:[#allocation8 + $0x4] sm:$0xf]
    %v368 = vld [vmem:[#allocation8 + $0x8] sm:$0xf]
    %v369 = vld [vmem:[#allocation8 + $0xc] sm:$0xf]
    %v370 = vld [vmem:[#allocation8 + $0x10] sm:$0xf]
    %v371 = vld [vmem:[#allocation8 + $0x14] sm:$0xf]
    %v372 = vld [vmem:[#allocation8 + $0x18] sm:$0xf]
    %v373 = vld [vmem:[#allocation8 + $0x1c] sm:$0xf]
    %v374 = vld [vmem:[#allocation8 + $0x20] sm:$0xf]
    %v375 = vld [vmem:[#allocation8 + $0x24] sm:$0xf]
    %v376 = vld [vmem:[#allocation8 + $0x28] sm:$0xf]
    %v377 = vld [vmem:[#allocation8 + $0x2c] sm:$0xf]
    %v378 = vld [vmem:[#allocation8 + $0x30] sm:$0xf]
    %v379 = vld [vmem:[#allocation8 + $0x34] sm:$0xf]
    %v380 = vld [vmem:[#allocation8 + $0x38] sm:$0xf]
    %v381 = vld [vmem:[#allocation8 + $0x3c] sm:$0xf]
    %v382 = vld [vmem:[%s6] sm:$0x1]
    %v384 = vlaneseq
    %v385 = vshrl.u32 %v384, 7
    %v386 = vsub.s32 0, %v385
    %v387 = vrot.slane %v382, %v386
    %v405 = vunpack.c.l.b16 %v366
    %v406 = vunpack.c.l.b16 %v367
    %v407 = vunpack.c.l.b16 %v368
    %v408 = vunpack.c.l.b16 %v369
    %v409 = vunpack.c.l.b16 %v370
    %v410 = vunpack.c.l.b16 %v371
    %v411 = vunpack.c.l.b16 %v372
    %v412 = vunpack.c.l.b16 %v373
    %v413 = vunpack.c.l.b16 %v374
    %v414 = vunpack.c.l.b16 %v375
    %v415 = vunpack.c.l.b16 %v376
    %v416 = vunpack.c.l.b16 %v377
    %v417 = vunpack.c.l.b16 %v378
    %v418 = vunpack.c.l.b16 %v379
    %v419 = vunpack.c.l.b16 %v380
    %v420 = vunpack.c.l.b16 %v381
    %v421 = vpack.c.b16 %v406, %v405
    %v422 = vpack.c.b16 %v408, %v407
    %v423 = vpack.c.b16 %v410, %v409
    %v424 = vpack.c.b16 %v412, %v411
    %v425 = vpack.c.b16 %v414, %v413
    %v426 = vpack.c.b16 %v416, %v415
    %v427 = vpack.c.b16 %v418, %v417
    %v428 = vpack.c.b16 %v420, %v419
    %437 = vmatprep.subr.bf16.mxu0 0
    %438 = vmatpush1.bf16.msra.mxu0 %v421
    %439 = vmatprep.subr.bf16.mxu0 0
    %440 = vmatpush1.bf16.msra.mxu0 %v422
    %441 = vmatprep.subr.bf16.mxu0 0
    %442 = vmatpush1.bf16.msra.mxu0 %v423
    %443 = vmatprep.subr.bf16.mxu0 0
    %444 = vmatpush1.bf16.msra.mxu0 %v424
    %445 = vmatprep.subr.bf16.mxu0 0
    %446 = vmatpush1.bf16.msra.mxu0 %v425
    %447 = vmatprep.subr.bf16.mxu0 0
    %448 = vmatpush1.bf16.msra.mxu0 %v426
    %449 = vmatprep.subr.bf16.mxu0 0
    %450 = vmatpush1.bf16.msra.mxu0 %v427
    %451 = vmatprep.subr.bf16.mxu0 0
    %452 = vmatpush1.bf16.msra.mxu0 %v428
    %453 = vmatprep.subr.bf16.mxu0 0
    %454 = vmatpush1.bf16.msra.mxu0 0
    %455 = vmatprep.subr.bf16.mxu0 0
    %456 = vmatpush1.bf16.msra.mxu0 0
    %457 = vmatprep.subr.bf16.mxu0 0
    %458 = vmatpush1.bf16.msra.mxu0 0
    %459 = vmatprep.subr.bf16.mxu0 0
    %460 = vmatpush1.bf16.msra.mxu0 0
    %461 = vmatprep.subr.bf16.mxu0 0
    %462 = vmatpush1.bf16.msra.mxu0 0
    %463 = vmatprep.subr.bf16.mxu0 0
    %464 = vmatpush1.bf16.msra.mxu0 0
    %465 = vmatprep.subr.bf16.mxu0 0
    %466 = vmatpush1.bf16.msra.mxu0 0
    %467 = vmatprep.subr.bf16.mxu0 0
    %468 = vmatpush1.bf16.msra.mxu0 0
    %469 = vmatprep.mubr.bf16.mxu0 0
    %470 = vmatmul.mubr.bf16.gmra.mrb[0].mxu0 %v365
    %v471 = vpop.f32.mrb[0].mxu0
    %v472 = vadd.f32 %v387, %v471
    %v473 = vpop.f32.mrb[0].mxu0
    %v474 = vpop.f32.mrb[0].mxu0
    %v475 = vpop.f32.mrb[0].mxu0
    %476 = vdwg.mxu0
    %v477 = vmax.f32 %v472, 0.0
    %v478 = vadd.f32 %v477, %v251
    %v479 = vpack.c.bf16 %v478, %v478
    %v480 = vld [vmem:[#allocation10] sm:$0xf]
    %v481 = vld [vmem:[#allocation10 + $0x4] sm:$0xf]
    %v482 = vld [vmem:[#allocation10 + $0x8] sm:$0xf]
    %v483 = vld [vmem:[#allocation10 + $0xc] sm:$0xf]
    %v484 = vld [vmem:[#allocation10 + $0x10] sm:$0xf]
    %v485 = vld [vmem:[#allocation10 + $0x14] sm:$0xf]
    %v486 = vld [vmem:[#allocation10 + $0x18] sm:$0xf]
    %v487 = vld [vmem:[#allocation10 + $0x1c] sm:$0xf]
    %v488 = vld [vmem:[#allocation10 + $0x20] sm:$0xf]
    %v489 = vld [vmem:[#allocation10 + $0x24] sm:$0xf]
    %v490 = vld [vmem:[#allocation10 + $0x28] sm:$0xf]
    %v491 = vld [vmem:[#allocation10 + $0x2c] sm:$0xf]
    %v492 = vld [vmem:[#allocation10 + $0x30] sm:$0xf]
    %v493 = vld [vmem:[#allocation10 + $0x34] sm:$0xf]
    %v494 = vld [vmem:[#allocation10 + $0x38] sm:$0xf]
    %v495 = vld [vmem:[#allocation10 + $0x3c] sm:$0xf]
    %v496 = vld [vmem:[%s8] sm:$0x1]
    %v498 = vlaneseq
    %v499 = vshrl.u32 %v498, 7
    %v500 = vsub.s32 0, %v499
    %v501 = vrot.slane %v496, %v500
    %v519 = vunpack.c.l.b16 %v480
    %v520 = vunpack.c.l.b16 %v481
    %v521 = vunpack.c.l.b16 %v482
    %v522 = vunpack.c.l.b16 %v483
    %v523 = vunpack.c.l.b16 %v484
    %v524 = vunpack.c.l.b16 %v485
    %v525 = vunpack.c.l.b16 %v486
    %v526 = vunpack.c.l.b16 %v487
    %v527 = vunpack.c.l.b16 %v488
    %v528 = vunpack.c.l.b16 %v489
    %v529 = vunpack.c.l.b16 %v490
    %v530 = vunpack.c.l.b16 %v491
    %v531 = vunpack.c.l.b16 %v492
    %v532 = vunpack.c.l.b16 %v493
    %v533 = vunpack.c.l.b16 %v494
    %v534 = vunpack.c.l.b16 %v495
    %v535 = vpack.c.b16 %v520, %v519
    %v536 = vpack.c.b16 %v522, %v521
    %v537 = vpack.c.b16 %v524, %v523
    %v538 = vpack.c.b16 %v526, %v525
    %v539 = vpack.c.b16 %v528, %v527
    %v540 = vpack.c.b16 %v530, %v529
    %v541 = vpack.c.b16 %v532, %v531
    %v542 = vpack.c.b16 %v534, %v533
    %551 = vmatprep.subr.bf16.mxu0 0
    %552 = vmatpush1.bf16.msra.mxu0 %v535
    %553 = vmatprep.subr.bf16.mxu0 0
    %554 = vmatpush1.bf16.msra.mxu0 %v536
    %555 = vmatprep.subr.bf16.mxu0 0
    %556 = vmatpush1.bf16.msra.mxu0 %v537
    %557 = vmatprep.subr.bf16.mxu0 0
    %558 = vmatpush1.bf16.msra.mxu0 %v538
    %559 = vmatprep.subr.bf16.mxu0 0
    %560 = vmatpush1.bf16.msra.mxu0 %v539
    %561 = vmatprep.subr.bf16.mxu0 0
    %562 = vmatpush1.bf16.msra.mxu0 %v540
    %563 = vmatprep.subr.bf16.mxu0 0
    %564 = vmatpush1.bf16.msra.mxu0 %v541
    %565 = vmatprep.subr.bf16.mxu0 0
    %566 = vmatpush1.bf16.msra.mxu0 %v542
    %567 = vmatprep.subr.bf16.mxu0 0
    %568 = vmatpush1.bf16.msra.mxu0 0
    %569 = vmatprep.subr.bf16.mxu0 0
    %570 = vmatpush1.bf16.msra.mxu0 0
    %571 = vmatprep.subr.bf16.mxu0 0
    %572 = vmatpush1.bf16.msra.mxu0 0
    %573 = vmatprep.subr.bf16.mxu0 0
    %574 = vmatpush1.bf16.msra.mxu0 0
    %575 = vmatprep.subr.bf16.mxu0 0
    %576 = vmatpush1.bf16.msra.mxu0 0
    %577 = vmatprep.subr.bf16.mxu0 0
    %578 = vmatpush1.bf16.msra.mxu0 0
    %579 = vmatprep.subr.bf16.mxu0 0
    %580 = vmatpush1.bf16.msra.mxu0 0
    %581 = vmatprep.subr.bf16.mxu0 0
    %582 = vmatpush1.bf16.msra.mxu0 0
    %583 = vmatprep.mubr.bf16.mxu0 0
    %584 = vmatmul.mubr.bf16.gmra.mrb[0].mxu0 %v479
    %v585 = vpop.f32.mrb[0].mxu0
    %v586 = vadd.f32 %v501, %v585
    %v587 = vpop.f32.mrb[0].mxu0
    %v588 = vpop.f32.mrb[0].mxu0
    %v589 = vpop.f32.mrb[0].mxu0
    %590 = vdwg.mxu0
    %v591 = vmax.f32 %v586, 0.0
    %v592 = vpack.c.bf16 %v591, %v591
    %v593 = vld [vmem:[#allocation11] sm:$0xf]
    %v594 = vld [vmem:[#allocation11 + $0x4] sm:$0xf]
    %v595 = vld [vmem:[#allocation11 + $0x8] sm:$0xf]
    %v596 = vld [vmem:[#allocation11 + $0xc] sm:$0xf]
    %v597 = vld [vmem:[#allocation11 + $0x10] sm:$0xf]
    %v598 = vld [vmem:[#allocation11 + $0x14] sm:$0xf]
    %v599 = vld [vmem:[#allocation11 + $0x18] sm:$0xf]
    %v600 = vld [vmem:[#allocation11 + $0x1c] sm:$0xf]
    %v601 = vld [vmem:[#allocation11 + $0x20] sm:$0xf]
    %v602 = vld [vmem:[#allocation11 + $0x24] sm:$0xf]
    %v603 = vld [vmem:[#allocation11 + $0x28] sm:$0xf]
    %v604 = vld [vmem:[#allocation11 + $0x2c] sm:$0xf]
    %v605 = vld [vmem:[#allocation11 + $0x30] sm:$0xf]
    %v606 = vld [vmem:[#allocation11 + $0x34] sm:$0xf]
    %v607 = vld [vmem:[#allocation11 + $0x38] sm:$0xf]
    %v608 = vld [vmem:[#allocation11 + $0x3c] sm:$0xf]
    %v609 = vld [vmem:[%s10] sm:$0x1]
    %v611 = vlaneseq
    %v612 = vshrl.u32 %v611, 7
    %v613 = vsub.s32 0, %v612
    %v614 = vrot.slane %v609, %v613
    %v632 = vunpack.c.l.b16 %v593
    %v633 = vunpack.c.l.b16 %v594
    %v634 = vunpack.c.l.b16 %v595
    %v635 = vunpack.c.l.b16 %v596
    %v636 = vunpack.c.l.b16 %v597
    %v637 = vunpack.c.l.b16 %v598
    %v638 = vunpack.c.l.b16 %v599
    %v639 = vunpack.c.l.b16 %v600
    %v640 = vunpack.c.l.b16 %v601
    %v641 = vunpack.c.l.b16 %v602
    %v642 = vunpack.c.l.b16 %v603
    %v643 = vunpack.c.l.b16 %v604
    %v644 = vunpack.c.l.b16 %v605
    %v645 = vunpack.c.l.b16 %v606
    %v646 = vunpack.c.l.b16 %v607
    %v647 = vunpack.c.l.b16 %v608
    %v648 = vpack.c.b16 %v633, %v632
    %v649 = vpack.c.b16 %v635, %v634
    %v650 = vpack.c.b16 %v637, %v636
    %v651 = vpack.c.b16 %v639, %v638
    %v652 = vpack.c.b16 %v641, %v640
    %v653 = vpack.c.b16 %v643, %v642
    %v654 = vpack.c.b16 %v645, %v644
    %v655 = vpack.c.b16 %v647, %v646
    %664 = vmatprep.subr.bf16.mxu0 0
    %665 = vmatpush1.bf16.msra.mxu0 %v648
    %666 = vmatprep.subr.bf16.mxu0 0
    %667 = vmatpush1.bf16.msra.mxu0 %v649
    %668 = vmatprep.subr.bf16.mxu0 0
    %669 = vmatpush1.bf16.msra.mxu0 %v650
    %670 = vmatprep.subr.bf16.mxu0 0
    %671 = vmatpush1.bf16.msra.mxu0 %v651
    %672 = vmatprep.subr.bf16.mxu0 0
    %673 = vmatpush1.bf16.msra.mxu0 %v652
    %674 = vmatprep.subr.bf16.mxu0 0
    %675 = vmatpush1.bf16.msra.mxu0 %v653
    %676 = vmatprep.subr.bf16.mxu0 0
    %677 = vmatpush1.bf16.msra.mxu0 %v654
    %678 = vmatprep.subr.bf16.mxu0 0
    %679 = vmatpush1.bf16.msra.mxu0 %v655
    %680 = vmatprep.subr.bf16.mxu0 0
    %681 = vmatpush1.bf16.msra.mxu0 0
    %682 = vmatprep.subr.bf16.mxu0 0
    %683 = vmatpush1.bf16.msra.mxu0 0
    %684 = vmatprep.subr.bf16.mxu0 0
    %685 = vmatpush1.bf16.msra.mxu0 0
    %686 = vmatprep.subr.bf16.mxu0 0
    %687 = vmatpush1.bf16.msra.mxu0 0
    %688 = vmatprep.subr.bf16.mxu0 0
    %689 = vmatpush1.bf16.msra.mxu0 0
    %690 = vmatprep.subr.bf16.mxu0 0
    %691 = vmatpush1.bf16.msra.mxu0 0
    %692 = vmatprep.subr.bf16.mxu0 0
    %693 = vmatpush1.bf16.msra.mxu0 0
    %694 = vmatprep.subr.bf16.mxu0 0
    %695 = vmatpush1.bf16.msra.mxu0 0
    %696 = vmatprep.mubr.bf16.mxu0 0
    %697 = vmatmul.mubr.bf16.gmra.mrb[0].mxu0 %v592
    %v698 = vpop.f32.mrb[0].mxu0
    %v699 = vadd.f32 %v614, %v698
    %v700 = vpop.f32.mrb[0].mxu0
    %v701 = vpop.f32.mrb[0].mxu0
    %v702 = vpop.f32.mrb[0].mxu0
    %703 = vdwg.mxu0
    %v704 = vmax.f32 %v699, 0.0
    %v705 = vadd.f32 %v704, %v478
    %v706 = vpack.c.bf16 %v705, %v705
    %v707 = vld [vmem:[#allocation13] sm:$0xf]
    %v708 = vld [vmem:[#allocation13 + $0x4] sm:$0xf]
    %v709 = vld [vmem:[#allocation13 + $0x8] sm:$0xf]
    %v710 = vld [vmem:[#allocation13 + $0xc] sm:$0xf]
    %v711 = vld [vmem:[#allocation13 + $0x10] sm:$0xf]
    %v712 = vld [vmem:[#allocation13 + $0x14] sm:$0xf]
    %v713 = vld [vmem:[#allocation13 + $0x18] sm:$0xf]
    %v714 = vld [vmem:[#allocation13 + $0x1c] sm:$0xf]
    %v715 = vld [vmem:[#allocation13 + $0x20] sm:$0xf]
    %v716 = vld [vmem:[#allocation13 + $0x24] sm:$0xf]
    %v717 = vld [vmem:[#allocation13 + $0x28] sm:$0xf]
    %v718 = vld [vmem:[#allocation13 + $0x2c] sm:$0xf]
    %v719 = vld [vmem:[#allocation13 + $0x30] sm:$0xf]
    %v720 = vld [vmem:[#allocation13 + $0x34] sm:$0xf]
    %v721 = vld [vmem:[#allocation13 + $0x38] sm:$0xf]
    %v722 = vld [vmem:[#allocation13 + $0x3c] sm:$0xf]
    %v723 = vld [vmem:[%s12] sm:$0x1]
    %v725 = vlaneseq
    %v726 = vshrl.u32 %v725, 7
    %v727 = vsub.s32 0, %v726
    %v728 = vrot.slane %v723, %v727
    %v746 = vunpack.c.l.b16 %v707
    %v747 = vunpack.c.l.b16 %v708
    %v748 = vunpack.c.l.b16 %v709
    %v749 = vunpack.c.l.b16 %v710
    %v750 = vunpack.c.l.b16 %v711
    %v751 = vunpack.c.l.b16 %v712
    %v752 = vunpack.c.l.b16 %v713
    %v753 = vunpack.c.l.b16 %v714
    %v754 = vunpack.c.l.b16 %v715
    %v755 = vunpack.c.l.b16 %v716
    %v756 = vunpack.c.l.b16 %v717
    %v757 = vunpack.c.l.b16 %v718
    %v758 = vunpack.c.l.b16 %v719
    %v759 = vunpack.c.l.b16 %v720
    %v760 = vunpack.c.l.b16 %v721
    %v761 = vunpack.c.l.b16 %v722
    %v762 = vpack.c.b16 %v747, %v746
    %v763 = vpack.c.b16 %v749, %v748
    %v764 = vpack.c.b16 %v751, %v750
    %v765 = vpack.c.b16 %v753, %v752
    %v766 = vpack.c.b16 %v755, %v754
    %v767 = vpack.c.b16 %v757, %v756
    %v768 = vpack.c.b16 %v759, %v758
    %v769 = vpack.c.b16 %v761, %v760
    %778 = vmatprep.subr.bf16.mxu0 0
    %779 = vmatpush1.bf16.msra.mxu0 %v762
    %780 = vmatprep.subr.bf16.mxu0 0
    %781 = vmatpush1.bf16.msra.mxu0 %v763
    %782 = vmatprep.subr.bf16.mxu0 0
    %783 = vmatpush1.bf16.msra.mxu0 %v764
    %784 = vmatprep.subr.bf16.mxu0 0
    %785 = vmatpush1.bf16.msra.mxu0 %v765
    %786 = vmatprep.subr.bf16.mxu0 0
    %787 = vmatpush1.bf16.msra.mxu0 %v766
    %788 = vmatprep.subr.bf16.mxu0 0
    %789 = vmatpush1.bf16.msra.mxu0 %v767
    %790 = vmatprep.subr.bf16.mxu0 0
    %791 = vmatpush1.bf16.msra.mxu0 %v768
    %792 = vmatprep.subr.bf16.mxu0 0
    %793 = vmatpush1.bf16.msra.mxu0 %v769
    %794 = vmatprep.subr.bf16.mxu0 0
    %795 = vmatpush1.bf16.msra.mxu0 0
    %796 = vmatprep.subr.bf16.mxu0 0
    %797 = vmatpush1.bf16.msra.mxu0 0
    %798 = vmatprep.subr.bf16.mxu0 0
    %799 = vmatpush1.bf16.msra.mxu0 0
    %800 = vmatprep.subr.bf16.mxu0 0
    %801 = vmatpush1.bf16.msra.mxu0 0
    %802 = vmatprep.subr.bf16.mxu0 0
    %803 = vmatpush1.bf16.msra.mxu0 0
    %804 = vmatprep.subr.bf16.mxu0 0
    %805 = vmatpush1.bf16.msra.mxu0 0
    %806 = vmatprep.subr.bf16.mxu0 0
    %807 = vmatpush1.bf16.msra.mxu0 0
    %808 = vmatprep.subr.bf16.mxu0 0
    %809 = vmatpush1.bf16.msra.mxu0 0
    %810 = vmatprep.mubr.bf16.mxu0 0
    %811 = vmatmul.mubr.bf16.gmra.mrb[0].mxu0 %v706
    %v812 = vpop.f32.mrb[0].mxu0
    %v813 = vadd.f32 %v728, %v812
    %v814 = vpop.f32.mrb[0].mxu0
    %v815 = vpop.f32.mrb[0].mxu0
    %v816 = vpop.f32.mrb[0].mxu0
    %817 = vdwg.mxu0
    %818 = vst [vmem:[#allocation14] sm:$0xff] %v813
    // Predicated region
    $region82: #{tpu_custom_call.1} parent=1 // pred_check
      _
    $region83: #{tpu_custom_call.1} parent=1 // pred_check_branch
      %820 = sbr.rel (0) target = $region85
    $region84: #{tpu_custom_call.1} parent=1 // pred_region
      %s822 = ssub.s32 128, 128
      %823 = vsyncadd [#allocation4], %s822
      %s825 = sshll.u32 [#allocation14], 4
      %s826 = int_to_ptr.vmem [resolvable:$true] %s825
      %828 = dma.vmem_to_hbm [thread:$0]  %s826, 128, %s13, [#allocation4]
    $region85: #{tpu_custom_call.1} parent=1 // pred_fallthru
      _
    // Predicated region
    $region86: #{tpu_custom_call.1} parent=1 // pred_check
      _
    $region87: #{tpu_custom_call.1} parent=1 // pred_check_branch
      %830 = sbr.rel (0) target = $region89
    $region88: #{tpu_custom_call.1} parent=1 // pred_region
      %831 = dma.done [#allocation4], 128
    $region89: #{tpu_custom_call.1} parent=1 // pred_fallthru
      _
    %832 = vsyncpa [#allocation3], 1
    %833 = vsyncpa [#allocation6], 1
    %834 = vsyncpa [#allocation9], 1
    %835 = vsyncpa [#allocation12], 1
    %836 = vsyncpa [#allocation4], 1

</llo_original>
